<compile_context>
chip_gen: v7x
topology: tpu7x:2x2x1
jax: 0.10.0
libtpu: 0.0.40
codegen_flags: <defaults>
</compile_context>

<pallas_src>
import jax
import jax.numpy as jnp
from jax import lax
from jax.experimental import pallas as pl
from jax.experimental.pallas import tpu as pltpu


def _round_up(x, m):
    return (x + m - 1) // m * m


def _dam_kernel(q_ref, k_ref, v_ref, o_ref):
    # q block: (tn, mem_dim); k/v resident: (mem_size, mem_dim), f32,
    # k already carries the beta/sqrt(mem_dim) scale, bk already dropped.
    q = q_ref[...].astype(jnp.float32)           # no-op for f32 I/O
    k = k_ref[...]
    v = v_ref[...]

    # scores = scaled q @ k^T, contracting dim 1 with dim 1 so k^T is never
    # materialized (no XLU transpose between the two MXU ops).
    scores = lax.dot_general(
        q, k,
        dimension_numbers=(((1,), (1,)), ((), ())),
        preferred_element_type=jnp.float32)       # (tn, mem_size)

    # Row softmax in f32; normalization deferred past the value matmul.
    m = jnp.max(scores, axis=1, keepdims=True)
    e = jnp.exp(scores - m)                       # (tn, mem_size)
    denom = jnp.sum(e, axis=1, keepdims=True)     # (tn, 1)

    o = jnp.dot(e, v, preferred_element_type=jnp.float32)   # (tn, mem_dim)
    o_ref[...] = (o / denom).astype(o_ref.dtype)             # exact divide


def dam_layer_forward(q, weights, wk, bk, wv, bv, *, beta,
                      block_n=512, out_dtype=None):
    """Pallas forward for DAM_layer.

    q        : (N, mem_dim)          (bf16 accepted; halves q/out HBM traffic)
    weights  : (mem_size, mem_dim)
    wk, wv   : (mem_dim, mem_dim)    nn.Linear weight layout (out, in)
    bk, bv   : (1, mem_dim)
    block_n  : query-batch tile; sweep {256, 512, 1024} — 512 is the default
               sweet spot (per-grid-step overhead ~0.35 us, kernel is
               HBM-streaming-bound on q/out at large N).
    """
    n, mem_dim = q.shape
    mem_size = weights.shape[0]
    scale = jnp.float32(beta) / (mem_dim ** 0.5)
    if out_dtype is None:
        out_dtype = q.dtype

    # ---- Hoisted, q-independent projections (plain XLA, ~131 KFLOP total) ----
    w32 = weights.astype(jnp.float32)
    # bk dropped: softmax over dim=1 is invariant to the per-row constant q.bk.
    k = (w32 @ wk.astype(jnp.float32).T) * scale               # (mem_size, mem_dim)
    v = w32 @ wv.astype(jnp.float32).T + bv.astype(jnp.float32)  # (mem_size, mem_dim)

    # ---- Query-batch tiling ----
    n_al = _round_up(n, 8)                 # sublane alignment
    tn = min(block_n, n_al)
    # v7x has 2 TensorCores; make sure the "parallel" axis has >=2 steps when
    # the batch is splittable, otherwise one core idles.  On v5e/v6e (1 TC)
    # the extra step is ~0.35 us — negligible.
    if n_al >= 16 and n_al // tn < 2:
        tn = _round_up((n_al + 1) // 2, 8)
    n_pad = _round_up(n, tn)
    if n_pad != n:
        q = jnp.pad(q, ((0, n_pad - n), (0, 0)))
    grid = (n_pad // tn,)

    out = pl.pallas_call(
        _dam_kernel,
        out_shape=jax.ShapeDtypeStruct((n_pad, mem_dim), out_dtype),
        grid=grid,
        in_specs=[
            pl.BlockSpec((tn, mem_dim), lambda i: (i, 0)),        # q block (streamed)
            pl.BlockSpec((mem_size, mem_dim), lambda i: (0, 0)),  # k (resident)
            pl.BlockSpec((mem_size, mem_dim), lambda i: (0, 0)),  # v (resident)
        ],
        out_specs=pl.BlockSpec((tn, mem_dim), lambda i: (i, 0)),
        compiler_params=pltpu.CompilerParams(
            dimension_semantics=("parallel",)),   # v7x: shard batch over both TCs
    )(q, k, v)
    return out[:n]


def dam_layer_reference(q, weights, wk, bk, wv, bv, *, beta):
    k = weights @ wk.T + bk
    v = weights @ wv.T + bv
    mem_dim = q.shape[-1]
    scores = beta * (q @ k.T) / (mem_dim ** 0.5)
    attn = jax.nn.softmax(scores, axis=1)
    return attn @ v


if __name__ == "__main__":
    # Small shapes consistent with the module.
    mem_size = 64
    mem_dim = 32
    batch = 8
    beta = 1.5

    key = jax.random.PRNGKey(0)
    k_w, k_wk, k_bk, k_wv, k_bv, k_q = jax.random.split(key, 6)

    # nn.init.normal_(weights, mean=0.0, std=0.6)
    weights = 0.6 * jax.random.normal(k_w, (mem_size, mem_dim), jnp.float32)
    # Linear_projection(mem_dim, mem_dim): nn.Linear-style init.
    bound = 1.0 / (mem_dim ** 0.5)
    wk = jax.random.uniform(k_wk, (mem_dim, mem_dim), jnp.float32, -bound, bound)
    bk = jax.random.uniform(k_bk, (1, mem_dim), jnp.float32, -bound, bound)
    wv = jax.random.uniform(k_wv, (mem_dim, mem_dim), jnp.float32, -bound, bound)
    bv = jax.random.uniform(k_bv, (1, mem_dim), jnp.float32, -bound, bound)

    q = jax.random.normal(k_q, (batch, mem_dim), jnp.float32)

    out = dam_layer_forward(q, weights, wk, bk, wv, bv, beta=beta)
    out = jax.block_until_ready(out)

    ref = dam_layer_reference(q, weights, wk, bk, wv, bv, beta=beta)
    assert out.shape == (batch, mem_dim)
    # Exact divide now -> tight tolerance (no approx-reciprocal slack needed).
    assert jnp.allclose(out, ref, atol=1e-5, rtol=1e-5), "mismatch vs reference"

    print("KERNEL_OK")
</pallas_src>

<mosaic_0001>
module attributes {stable_mosaic.version = 11 : i64} {
  func.func @_dam_kernel(%arg0: i32, %arg1: memref<8x32xf32, #tpu.memory_space<vmem>>, %arg2: memref<64x32xf32, #tpu.memory_space<vmem>>, %arg3: memref<64x32xf32, #tpu.memory_space<vmem>>, %arg4: memref<8x32xf32, #tpu.memory_space<vmem>>) attributes {dimension_semantics = [#tpu.dimension_semantics<parallel>], iteration_bounds = array<i64: 1>, scalar_prefetch = 0 : i64, scratch_operands = 0 : i64, tpu.core_type = #tpu.core_type<tc>, window_params = [{transform_indices = @transform_0, window_bounds = array<i64: 8, 32>}, {pipeline_mode = #tpu.pipeline_mode<synchronous>, transform_indices = @transform_1, window_bounds = array<i64: 64, 32>}, {pipeline_mode = #tpu.pipeline_mode<synchronous>, transform_indices = @transform_2, window_bounds = array<i64: 64, 32>}, {transform_indices = @transform_3, window_bounds = array<i64: 8, 32>}]} {
    %c0 = arith.constant 0 : index
    %c0_0 = arith.constant 0 : index
    %0 = vector.load %arg1[%c0, %c0_0] : memref<8x32xf32, #tpu.memory_space<vmem>>, vector<8x32xf32>
    %c0_1 = arith.constant 0 : index
    %c0_2 = arith.constant 0 : index
    %1 = vector.load %arg2[%c0_1, %c0_2] : memref<64x32xf32, #tpu.memory_space<vmem>>, vector<64x32xf32>
    %c0_3 = arith.constant 0 : index
    %c0_4 = arith.constant 0 : index
    %2 = vector.load %arg3[%c0_3, %c0_4] : memref<64x32xf32, #tpu.memory_space<vmem>>, vector<64x32xf32>
    %cst = arith.constant dense<0.000000e+00> : vector<8x64xf32>
    %3 = tpu.matmul %0, %1, %cst {dimension_numbers = #tpu.dot_dimension_numbers<[1], [1], [0], [0], [0, 0, 1, 0], [], []>} : vector<8x32xf32>, vector<64x32xf32>, vector<8x64xf32> -> vector<8x64xf32>
    %cst_5 = arith.constant dense<0xFF800000> : vector<8xf32>
    %4 = vector.multi_reduction <maximumf>, %3, %cst_5 [1] : vector<8x64xf32> to vector<8xf32>
    %5 = vector.shape_cast %4 : vector<8xf32> to vector<8x1xf32>
    %6 = vector.broadcast %5 : vector<8x1xf32> to vector<8x64xf32>
    %7 = arith.subf %3, %6 : vector<8x64xf32>
    %8 = math.exp %7 : vector<8x64xf32>
    %cst_6 = arith.constant dense<0.000000e+00> : vector<8xf32>
    %9 = vector.multi_reduction <add>, %8, %cst_6 [1] : vector<8x64xf32> to vector<8xf32>
    %10 = vector.shape_cast %9 : vector<8xf32> to vector<8x1xf32>
    %cst_7 = arith.constant dense<0.000000e+00> : vector<8x32xf32>
    %11 = tpu.matmul %8, %2, %cst_7 {dimension_numbers = #tpu.dot_dimension_numbers<[1], [0], [0], [1], [0, 0, 1, 1], [], []>} : vector<8x64xf32>, vector<64x32xf32>, vector<8x32xf32> -> vector<8x32xf32>
    %12 = vector.broadcast %10 : vector<8x1xf32> to vector<8x32xf32>
    %13 = arith.divf %11, %12 : vector<8x32xf32>
    %c0_8 = arith.constant 0 : index
    %c0_9 = arith.constant 0 : index
    %14 = vector.load %arg4[%c0_8, %c0_9] : memref<8x32xf32, #tpu.memory_space<vmem>>, vector<8x32xf32>
    tpu.vector_store %arg4[%c0_8, %c0_9], %13 {strides = array<i32>} : memref<8x32xf32, #tpu.memory_space<vmem>>, vector<8x32xf32>,
    return
  }
  func.func @transform_0(%arg0: i32) -> (i32, i32) {
    %c0_i32 = arith.constant 0 : i32
    %c0_i32_0 = arith.constant 0 : i32
    return %arg0, %c0_i32 : i32, i32
  }
  func.func @transform_1(%arg0: i32) -> (i32, i32) {
    %c0_i32 = arith.constant 0 : i32
    %c0_i32_0 = arith.constant 0 : i32
    %c0_i32_1 = arith.constant 0 : i32
    return %c0_i32, %c0_i32_0 : i32, i32
  }
  func.func @transform_2(%arg0: i32) -> (i32, i32) {
    %c0_i32 = arith.constant 0 : i32
    %c0_i32_0 = arith.constant 0 : i32
    %c0_i32_1 = arith.constant 0 : i32
    return %c0_i32, %c0_i32_0 : i32, i32
  }
  func.func @transform_3(%arg0: i32) -> (i32, i32) {
    %c0_i32 = arith.constant 0 : i32
    %c0_i32_0 = arith.constant 0 : i32
    return %arg0, %c0_i32 : i32, i32
  }
}

</mosaic_0001>

<llo_original>
// kernel: tpu_custom_call.1
$region0: #{tpu_custom_call.1}
  #allocation0 [shape = 'u32[]', space=smem, size = 0x4, offset = 0x4, fixed_abs, tag = 'smem constant byte address 0x4 - core index']
  #allocation1 [shape = 'u32[144,128]{1,0:T(1,128)}', space=vmem, size = 0x12000, scoped, tag = 'internal scratch']
  %s0 = inlined_call_operand.vmem [shape: f32[8,32], index: 0, kind: input, shape index: {}]
  %s1 = inlined_call_operand.vmem [shape: f32[64,32], index: 1, kind: input, shape index: {}]
  %s2 = inlined_call_operand.vmem [shape: f32[64,32], index: 2, kind: input, shape index: {}]
  %s3 = inlined_call_operand.hbm [shape: f32[8,32], index: 3, kind: output, shape index: {}]
  %s4 = sld [smem:[#allocation0]]
  $region22: #{tpu_custom_call.1} parent=0
    _
  %s6 = ssub.s32 1, %s4
  %s7 = scalar_select 0, %s6, %s4
  $region1: #{tpu_custom_call.1} parent=0
    #allocation2 [shape = 'u8[4096]{0}', space=vmem, size = 0x1000, scoped, tag = 'output window, operand 0, single buffered']
    #allocation3 [shape = 's32[1]{0}', space=sflag, size = 0x4, scoped, tag = 'scoped memory for tpu_custom_call.1']
    %8 = vsyncpa [#allocation3], 0
    // Predicated region
    $region2: #{tpu_custom_call.1} parent=1 // pred_check
      _
    $region3: #{tpu_custom_call.1} parent=1 // pred_check_branch
      %10 = sbr.rel (0) target = $region5
    $region4: #{tpu_custom_call.1} parent=1 // pred_region
      _
    $region5: #{tpu_custom_call.1} parent=1 // pred_fallthru
      _
    // Predicated region
    $region6: #{tpu_custom_call.1} parent=1 // pred_check
      _
    $region7: #{tpu_custom_call.1} parent=1 // pred_check_branch
      %12 = sbr.rel (0) target = $region9
    $region8: #{tpu_custom_call.1} parent=1 // pred_region
      _
    $region9: #{tpu_custom_call.1} parent=1 // pred_fallthru
      _
    // Predicated region
    $region10: #{tpu_custom_call.1} parent=1 // pred_check
      _
    $region11: #{tpu_custom_call.1} parent=1 // pred_check_branch
      %14 = sbr.rel (0) target = $region13
    $region12: #{tpu_custom_call.1} parent=1 // pred_region
      _
    $region13: #{tpu_custom_call.1} parent=1 // pred_fallthru
      _
    %v15 = vld [vmem:[%s0] sm:$0xff]
    %v16 = vld [vmem:[%s1] sm:$0xff]
    %v17 = vld [vmem:[%s1 + $0x8] sm:$0xff]
    %v18 = vld [vmem:[%s1 + $0x10] sm:$0xff]
    %v19 = vld [vmem:[%s1 + $0x18] sm:$0xff]
    %v20 = vld [vmem:[%s1 + $0x20] sm:$0xff]
    %v21 = vld [vmem:[%s1 + $0x28] sm:$0xff]
    %v22 = vld [vmem:[%s1 + $0x30] sm:$0xff]
    %v23 = vld [vmem:[%s1 + $0x38] sm:$0xff]
    %v24 = vld [vmem:[%s2] sm:$0xff]
    %v25 = vld [vmem:[%s2 + $0x8] sm:$0xff]
    %v26 = vld [vmem:[%s2 + $0x10] sm:$0xff]
    %v27 = vld [vmem:[%s2 + $0x18] sm:$0xff]
    %v28 = vld [vmem:[%s2 + $0x20] sm:$0xff]
    %v29 = vld [vmem:[%s2 + $0x28] sm:$0xff]
    %v30 = vld [vmem:[%s2 + $0x30] sm:$0xff]
    %v31 = vld [vmem:[%s2 + $0x38] sm:$0xff]
    %vm32 = vcmask 261120
    %v34 = vsel %vm32, %v15, 0
    %v37 = vsel %vm32, %v16, 0
    %v40 = vsel %vm32, %v17, 0
    %v43 = vsel %vm32, %v18, 0
    %v46 = vsel %vm32, %v19, 0
    %v49 = vsel %vm32, %v20, 0
    %v52 = vsel %vm32, %v21, 0
    %v55 = vsel %vm32, %v22, 0
    %v58 = vsel %vm32, %v23, 0
    %60 = vmatprep.subr.mxu0 0.0
    %61 = vmatpush1.xpose.msra.mxu0 %v37
    %62 = vmatprep.subr.mxu0 0.0
    %63 = vmatpush1.xpose.msra.mxu0 %v40
    %64 = vmatprep.subr.mxu0 0.0
    %65 = vmatpush1.xpose.msra.mxu0 %v43
    %66 = vmatprep.subr.mxu0 0.0
    %67 = vmatpush1.xpose.msra.mxu0 %v46
    %68 = vmatprep.subr.mxu0 0.0
    %69 = vmatpush1.xpose.msra.mxu0 %v49
    %70 = vmatprep.subr.mxu0 0.0
    %71 = vmatpush1.xpose.msra.mxu0 %v52
    %72 = vmatprep.subr.mxu0 0.0
    %73 = vmatpush1.xpose.msra.mxu0 %v55
    %74 = vmatprep.subr.mxu0 0.0
    %75 = vmatpush1.xpose.msra.mxu0 %v58
    %76 = vmatprep.subr.mxu0 0.0
    %77 = vmatpush1.xpose.msra.mxu0 0.0
    %78 = vmatprep.subr.mxu0 0.0
    %79 = vmatpush1.xpose.msra.mxu0 0.0
    %80 = vmatprep.subr.mxu0 0.0
    %81 = vmatpush1.xpose.msra.mxu0 0.0
    %82 = vmatprep.subr.mxu0 0.0
    %83 = vmatpush1.xpose.msra.mxu0 0.0
    %84 = vmatprep.subr.mxu0 0.0
    %85 = vmatpush1.xpose.msra.mxu0 0.0
    %86 = vmatprep.subr.mxu0 0.0
    %87 = vmatpush1.xpose.msra.mxu0 0.0
    %88 = vmatprep.subr.mxu0 0.0
    %89 = vmatpush1.xpose.msra.mxu0 0.0
    %90 = vmatprep.subr.mxu0 0.0
    %91 = vmatpush1.xpose.msra.mxu0 0.0
    %92 = vmatprep.subr.mxu0 0.0
    %93 = vmatpush1.xpose.msra.mxu0 0.0
    %94 = vmatprep.subr.mxu0 0.0
    %95 = vmatpush1.xpose.msra.mxu0 0.0
    %96 = vmatprep.subr.mxu0 0.0
    %97 = vmatpush1.xpose.msra.mxu0 0.0
    %98 = vmatprep.subr.mxu0 0.0
    %99 = vmatpush1.xpose.msra.mxu0 0.0
    %100 = vmatprep.subr.mxu0 0.0
    %101 = vmatpush1.xpose.msra.mxu0 0.0
    %102 = vmatprep.subr.mxu0 0.0
    %103 = vmatpush1.xpose.msra.mxu0 0.0
    %104 = vmatprep.subr.mxu0 0.0
    %105 = vmatpush1.xpose.msra.mxu0 0.0
    %106 = vmatprep.subr.mxu0 0.0
    %107 = vmatpush1.xpose.msra.mxu0 0.0
    %108 = vmatprep.subr.mxu0 0.0
    %109 = vmatpush1.xpose.msra.mxu0 0.0
    %110 = vmatprep.subr.mxu0 0.0
    %111 = vmatpush1.xpose.msra.mxu0 0.0
    %112 = vmatprep.subr.mxu0 0.0
    %113 = vmatpush1.xpose.msra.mxu0 0.0
    %114 = vmatprep.subr.mxu0 0.0
    %115 = vmatpush1.xpose.msra.mxu0 0.0
    %116 = vmatprep.subr.mxu0 0.0
    %117 = vmatpush1.xpose.msra.mxu0 0.0
    %118 = vmatprep.subr.mxu0 0.0
    %119 = vmatpush1.xpose.msra.mxu0 0.0
    %120 = vmatprep.subr.mxu0 0.0
    %121 = vmatpush1.xpose.msra.mxu0 0.0
    %122 = vmatprep.subr.mxu0 0.0
    %123 = vmatpush1.xpose.msra.mxu0 0.0
    %124 = vmatprep.mubr.f32.mxu0 0.0
    %125 = vmatmul.mubr.f32.gmra.mrb[0].mxu0 %v34
    %v126 = vpop.f32.mrb[0].mxu0
    %v127 = vadd.f32 0.0, %v126
    %v128 = vpop.f32.mrb[0].mxu0
    %129 = vdwg.mxu0
    %vm130 = vcmask 523264
    %v131 = vsel %vm130, %v127, -inf
    %132 = vmax.xlane.f32.xlu0 %v131
    %v133 = vpop.xlane.xlu0 %132
    %v134 = vsub.f32 %v127, %v133
    %v135 = vmul.f32 %v134, 1.442695
    %v136 = vpow.pop %v135
    %v137 = vsel %vm130, %v136, 0.0
    %138 = vadd.xlane.f32.xlu0 %v137
    %v139 = vpop.xlane.xlu0 %138
    %v141 = vsel %vm130, %v136, 0
    %143 = vmatprep.subr.mxu0 0.0
    %144 = vmatpush1.msra.mxu0 %v24
    %145 = vmatprep.subr.mxu0 0.0
    %146 = vmatpush1.msra.mxu0 %v25
    %147 = vmatprep.subr.mxu0 0.0
    %148 = vmatpush1.msra.mxu0 %v26
    %149 = vmatprep.subr.mxu0 0.0
    %150 = vmatpush1.msra.mxu0 %v27
    %151 = vmatprep.subr.mxu0 0.0
    %152 = vmatpush1.msra.mxu0 %v28
    %153 = vmatprep.subr.mxu0 0.0
    %154 = vmatpush1.msra.mxu0 %v29
    %155 = vmatprep.subr.mxu0 0.0
    %156 = vmatpush1.msra.mxu0 %v30
    %157 = vmatprep.subr.mxu0 0.0
    %158 = vmatpush1.msra.mxu0 %v31
    %159 = vmatprep.subr.mxu0 0.0
    %160 = vmatpush1.msra.mxu0 0.0
    %161 = vmatprep.subr.mxu0 0.0
    %162 = vmatpush1.msra.mxu0 0.0
    %163 = vmatprep.subr.mxu0 0.0
    %164 = vmatpush1.msra.mxu0 0.0
    %165 = vmatprep.subr.mxu0 0.0
    %166 = vmatpush1.msra.mxu0 0.0
    %167 = vmatprep.subr.mxu0 0.0
    %168 = vmatpush1.msra.mxu0 0.0
    %169 = vmatprep.subr.mxu0 0.0
    %170 = vmatpush1.msra.mxu0 0.0
    %171 = vmatprep.subr.mxu0 0.0
    %172 = vmatpush1.msra.mxu0 0.0
    %173 = vmatprep.subr.mxu0 0.0
    %174 = vmatpush1.msra.mxu0 0.0
    %175 = vmatprep.subr.mxu0 0.0
    %176 = vmatpush1.msra.mxu0 0.0
    %177 = vmatprep.subr.mxu0 0.0
    %178 = vmatpush1.msra.mxu0 0.0
    %179 = vmatprep.subr.mxu0 0.0
    %180 = vmatpush1.msra.mxu0 0.0
    %181 = vmatprep.subr.mxu0 0.0
    %182 = vmatpush1.msra.mxu0 0.0
    %183 = vmatprep.subr.mxu0 0.0
    %184 = vmatpush1.msra.mxu0 0.0
    %185 = vmatprep.subr.mxu0 0.0
    %186 = vmatpush1.msra.mxu0 0.0
    %187 = vmatprep.subr.mxu0 0.0
    %188 = vmatpush1.msra.mxu0 0.0
    %189 = vmatprep.subr.mxu0 0.0
    %190 = vmatpush1.msra.mxu0 0.0
    %191 = vmatprep.subr.mxu0 0.0
    %192 = vmatpush1.msra.mxu0 0.0
    %193 = vmatprep.subr.mxu0 0.0
    %194 = vmatpush1.msra.mxu0 0.0
    %195 = vmatprep.subr.mxu0 0.0
    %196 = vmatpush1.msra.mxu0 0.0
    %197 = vmatprep.subr.mxu0 0.0
    %198 = vmatpush1.msra.mxu0 0.0
    %199 = vmatprep.subr.mxu0 0.0
    %200 = vmatpush1.msra.mxu0 0.0
    %201 = vmatprep.subr.mxu0 0.0
    %202 = vmatpush1.msra.mxu0 0.0
    %203 = vmatprep.subr.mxu0 0.0
    %204 = vmatpush1.msra.mxu0 0.0
    %205 = vmatprep.subr.mxu0 0.0
    %206 = vmatpush1.msra.mxu0 0.0
    %207 = vmatprep.mubr.f32.mxu0 0.0
    %208 = vmatmul.mubr.f32.gmra.mrb[0].mxu0 %v141
    %v209 = vpop.f32.mrb[0].mxu0
    %v210 = vadd.f32 0.0, %v209
    %v211 = vpop.f32.mrb[0].mxu0
    %212 = vdwg.mxu0
    %v213 = vrcp.pop %v139
    %v214 = vmul.f32 %v210, %v213
    %215 = vst.msk [vmem:[#allocation2] sm:$0xff] %vm32, %v214
    // Predicated region
    $region14: #{tpu_custom_call.1} parent=1 // pred_check
      _
    $region15: #{tpu_custom_call.1} parent=1 // pred_check_branch
      %217 = sbr.rel (0) target = $region17
    $region16: #{tpu_custom_call.1} parent=1 // pred_region
      %s219 = ssub.s32 128, 128
      %220 = vsyncadd [#allocation3], %s219
      %s222 = sshll.u32 [#allocation2], 4
      %s223 = int_to_ptr.vmem [resolvable:$true] %s222
      %225 = dma.vmem_to_hbm [thread:$0]  %s223, 128, %s3, [#allocation3]
    $region17: #{tpu_custom_call.1} parent=1 // pred_fallthru
      _
    // Predicated region
    $region18: #{tpu_custom_call.1} parent=1 // pred_check
      _
    $region19: #{tpu_custom_call.1} parent=1 // pred_check_branch
      %227 = sbr.rel (0) target = $region21
    $region20: #{tpu_custom_call.1} parent=1 // pred_region
      %228 = dma.done [#allocation3], 128
    $region21: #{tpu_custom_call.1} parent=1 // pred_fallthru
      _
    %229 = vsyncpa [#allocation3], 1

</llo_original>
